<compile_context>
chip_gen: v5e
topology: v5e:2x2
jax: 0.10.0
libtpu: 0.0.40
codegen_flags: <defaults>
</compile_context>

<pallas_src>
import math

import jax
import jax.numpy as jnp
from jax import lax
from jax.experimental import pallas as pl
from jax.experimental.pallas import tpu as pltpu


def _round_up(x, m):
    return ((x + m - 1) // m) * m


def dylora_linear_kernel(x_ref, w_ref, down_ref, up_ref, bias_ref, o_ref):
    # Factorized LoRA:  out = x @ W^T + (x @ down^T) @ up_t + bias
    # (`scale` is pre-folded into the tiny up_t factor by the wrapper).
    dn = (((1,), (1,)), ((), ()))  # contract last dim of lhs with last dim of rhs

    base = lax.dot_general(x_ref[...], w_ref[...], dimension_numbers=dn,
                           preferred_element_type=jnp.float32)        # (TM, TN)
    xd = lax.dot_general(x_ref[...], down_ref[...], dimension_numbers=dn,
                         preferred_element_type=jnp.float32)          # (TM, r_pad)
    lora = jnp.dot(xd, up_ref[...].astype(jnp.float32),
                   preferred_element_type=jnp.float32)                # (TM, TN)

    o_ref[...] = (base + lora + bias_ref[...].astype(jnp.float32)).astype(o_ref.dtype)


def dylora_linear(x, w, up, down, bias, scale, *, tm_max=256, tn_max=512):
    """DyLora Linear forward:  F.linear(x, W + (up @ down) * scale, bias).

    x: (..., in), w: (out, in), up: (out, r), down: (r, in), bias: (out,).
    Computed in factorized form: x @ W^T + ((x @ down^T) @ (scale*up)^T) + bias.
    """
    orig_shape = x.shape
    in_dim = orig_shape[-1]
    out_dim = w.shape[0]
    r = down.shape[0]
    m = math.prod(orig_shape[:-1])
    x2 = x.reshape(m, in_dim)

    # dtype-aware sublane padding of the (tiny) rank dimension
    sublane = {2: 16, 1: 32}.get(jnp.dtype(up.dtype).itemsize, 8)
    r_pad = _round_up(max(r, 1), sublane)

    # tile sizes: lane-dense output (multiple of 128 on out axis), sublane-aligned M
    tm = min(tm_max, _round_up(m, 8))
    tn = min(tn_max, _round_up(out_dim, 128))
    m_pad = _round_up(m, tm)
    out_pad = _round_up(out_dim, tn)

    if m_pad != m:
        x2 = jnp.pad(x2, ((0, m_pad - m), (0, 0)))
    w_p = jnp.pad(w, ((0, out_pad - out_dim), (0, 0))) if out_pad != out_dim else w
    bias_p = jnp.pad(bias, (0, out_pad - out_dim)) if out_pad != out_dim else bias
    bias_p = bias_p.reshape(1, out_pad)

    # lane-dense LoRA factors; fold `scale` into the small up factor
    up_t = jnp.zeros((r_pad, out_pad), up.dtype)
    up_t = up_t.at[:r, :out_dim].set((up.T * scale).astype(up.dtype))
    down_p = jnp.zeros((r_pad, in_dim), down.dtype).at[:r, :].set(down)

    grid = (m_pad // tm, out_pad // tn)
    out = pl.pallas_call(
        dylora_linear_kernel,
        out_shape=jax.ShapeDtypeStruct((m_pad, out_pad), x.dtype),
        grid=grid,
        in_specs=[
            pl.BlockSpec((tm, in_dim), lambda i, j: (i, 0)),      # x tile
            pl.BlockSpec((tn, in_dim), lambda i, j: (j, 0)),      # W tile (streamed)
            pl.BlockSpec((r_pad, in_dim), lambda i, j: (0, 0)),   # down (tiny, resident)
            pl.BlockSpec((r_pad, tn), lambda i, j: (0, j)),       # scaled up^T tile
            pl.BlockSpec((1, tn), lambda i, j: (0, j)),           # bias tile
        ],
        out_specs=pl.BlockSpec((tm, tn), lambda i, j: (i, j)),
        compiler_params=pltpu.CompilerParams(
            dimension_semantics=("parallel", "parallel")),
    )(x2, w_p, down_p, up_t, bias_p)

    out = out[:m, :out_dim]
    return out.reshape(*orig_shape[:-1], out_dim)


if __name__ == "__main__":
    # ---- module hyper-parameters (Linear case) ----
    in_features = 32
    out_features = 32
    lora_dim = 4
    block_size = 1
    block_count = lora_dim // block_size
    alpha = 1.0

    key = jax.random.PRNGKey(0)
    k_w, k_bias, k_down, k_up, k_x = jax.random.split(key, 5)

    # org_module = nn.Linear(in_features, out_features): W (out, in), bias (out,)
    w_bound = 1.0 / math.sqrt(in_features)
    org_weight = jax.random.uniform(k_w, (out_features, in_features),
                                    jnp.float32, -w_bound, w_bound)
    org_bias = jax.random.uniform(k_bias, (out_features,),
                                  jnp.float32, -w_bound, w_bound)

    # down_list: lora_dim tensors of shape (1, in_features), kaiming_uniform(a=sqrt(5))
    #   -> uniform(-1/sqrt(in_features), 1/sqrt(in_features)). Stacked -> (lora_dim, in).
    d_bound = 1.0 / math.sqrt(in_features)
    down_full = jax.random.uniform(k_down, (lora_dim, in_features),
                                   jnp.float32, -d_bound, d_bound)

    # up_list: lora_dim tensors of shape (out_features, 1). __init__ zeros them;
    # small deterministic values used here so the LoRA delta path is exercised.
    up_full = 0.01 * jax.random.normal(k_up, (out_features, lora_dim), jnp.float32)

    # forward(): b = random.randint(0, block_count - 1); fixed deterministically.
    b = block_count - 1
    r = (b + 1) * block_size
    scale = alpha / (b + 1)

    # input: (batch=2, seq=8, hidden=32)
    x = jax.random.normal(k_x, (2, 8, in_features), jnp.float32)

    out = dylora_linear(x, org_weight, up_full[:, :r], down_full[:r, :],
                        org_bias, scale)
    out = jax.block_until_ready(out)

    # pure-JAX reference of the exact PyTorch semantics
    w_eff = org_weight + (up_full[:, :r] @ down_full[:r, :]) * alpha / (b + 1)
    ref = jnp.einsum("bsk,ok->bso", x, w_eff) + org_bias
    assert out.shape == ref.shape
    assert jnp.allclose(out, ref, atol=1e-5, rtol=1e-5), "mismatch vs reference"

    print("KERNEL_OK")
</pallas_src>

<mosaic_0001>
module attributes {stable_mosaic.version = 11 : i64} {
  func.func @dylora_linear_kernel(%arg0: i32, %arg1: i32, %arg2: memref<16x32xf32, #tpu.memory_space<vmem>>, %arg3: memref<128x32xf32, #tpu.memory_space<vmem>>, %arg4: memref<8x32xf32, #tpu.memory_space<vmem>>, %arg5: memref<8x128xf32, #tpu.memory_space<vmem>>, %arg6: memref<1x128xf32, #tpu.memory_space<vmem>>, %arg7: memref<16x128xf32, #tpu.memory_space<vmem>>) attributes {dimension_semantics = [#tpu.dimension_semantics<parallel>, #tpu.dimension_semantics<parallel>], iteration_bounds = array<i64: 1, 1>, scalar_prefetch = 0 : i64, scratch_operands = 0 : i64, tpu.core_type = #tpu.core_type<tc>, window_params = [{transform_indices = @transform_0, window_bounds = array<i64: 16, 32>}, {transform_indices = @transform_1, window_bounds = array<i64: 128, 32>}, {pipeline_mode = #tpu.pipeline_mode<synchronous>, transform_indices = @transform_2, window_bounds = array<i64: 8, 32>}, {transform_indices = @transform_3, window_bounds = array<i64: 8, 128>}, {transform_indices = @transform_4, window_bounds = array<i64: 1, 128>}, {transform_indices = @transform_5, window_bounds = array<i64: 16, 128>}]} {
    %c0 = arith.constant 0 : index
    %c0_0 = arith.constant 0 : index
    %0 = vector.load %arg2[%c0, %c0_0] : memref<16x32xf32, #tpu.memory_space<vmem>>, vector<16x32xf32>
    %c0_1 = arith.constant 0 : index
    %c0_2 = arith.constant 0 : index
    %1 = vector.load %arg3[%c0_1, %c0_2] : memref<128x32xf32, #tpu.memory_space<vmem>>, vector<128x32xf32>
    %cst = arith.constant dense<0.000000e+00> : vector<16x128xf32>
    %2 = tpu.matmul %0, %1, %cst {dimension_numbers = #tpu.dot_dimension_numbers<[1], [1], [0], [0], [0, 0, 1, 0], [], []>} : vector<16x32xf32>, vector<128x32xf32>, vector<16x128xf32> -> vector<16x128xf32>
    %c0_3 = arith.constant 0 : index
    %c0_4 = arith.constant 0 : index
    %3 = vector.load %arg2[%c0_3, %c0_4] : memref<16x32xf32, #tpu.memory_space<vmem>>, vector<16x32xf32>
    %c0_5 = arith.constant 0 : index
    %c0_6 = arith.constant 0 : index
    %4 = vector.load %arg4[%c0_5, %c0_6] : memref<8x32xf32, #tpu.memory_space<vmem>>, vector<8x32xf32>
    %cst_7 = arith.constant dense<0.000000e+00> : vector<16x8xf32>
    %5 = tpu.matmul %3, %4, %cst_7 {dimension_numbers = #tpu.dot_dimension_numbers<[1], [1], [0], [0], [0, 0, 1, 0], [], []>} : vector<16x32xf32>, vector<8x32xf32>, vector<16x8xf32> -> vector<16x8xf32>
    %c0_8 = arith.constant 0 : index
    %c0_9 = arith.constant 0 : index
    %6 = vector.load %arg5[%c0_8, %c0_9] : memref<8x128xf32, #tpu.memory_space<vmem>>, vector<8x128xf32>
    %cst_10 = arith.constant dense<0.000000e+00> : vector<16x128xf32>
    %7 = tpu.matmul %5, %6, %cst_10 {dimension_numbers = #tpu.dot_dimension_numbers<[1], [0], [0], [1], [0, 0, 1, 1], [], []>} : vector<16x8xf32>, vector<8x128xf32>, vector<16x128xf32> -> vector<16x128xf32>
    %8 = arith.addf %2, %7 : vector<16x128xf32>
    %c0_11 = arith.constant 0 : index
    %c0_12 = arith.constant 0 : index
    %9 = vector.load %arg6[%c0_11, %c0_12] : memref<1x128xf32, #tpu.memory_space<vmem>>, vector<1x128xf32>
    %10 = vector.broadcast %9 : vector<1x128xf32> to vector<16x128xf32>
    %11 = arith.addf %8, %10 : vector<16x128xf32>
    %c0_13 = arith.constant 0 : index
    %c0_14 = arith.constant 0 : index
    %12 = vector.load %arg7[%c0_13, %c0_14] : memref<16x128xf32, #tpu.memory_space<vmem>>, vector<16x128xf32>
    tpu.vector_store %arg7[%c0_13, %c0_14], %11 {strides = array<i32>} : memref<16x128xf32, #tpu.memory_space<vmem>>, vector<16x128xf32>,
    return
  }
  func.func @transform_0(%arg0: i32, %arg1: i32) -> (i32, i32) {
    %c0_i32 = arith.constant 0 : i32
    %c0_i32_0 = arith.constant 0 : i32
    return %arg0, %c0_i32 : i32, i32
  }
  func.func @transform_1(%arg0: i32, %arg1: i32) -> (i32, i32) {
    %c0_i32 = arith.constant 0 : i32
    %c0_i32_0 = arith.constant 0 : i32
    return %arg1, %c0_i32 : i32, i32
  }
  func.func @transform_2(%arg0: i32, %arg1: i32) -> (i32, i32) {
    %c0_i32 = arith.constant 0 : i32
    %c0_i32_0 = arith.constant 0 : i32
    %c0_i32_1 = arith.constant 0 : i32
    return %c0_i32, %c0_i32_0 : i32, i32
  }
  func.func @transform_3(%arg0: i32, %arg1: i32) -> (i32, i32) {
    %c0_i32 = arith.constant 0 : i32
    %c0_i32_0 = arith.constant 0 : i32
    return %c0_i32, %arg1 : i32, i32
  }
  func.func @transform_4(%arg0: i32, %arg1: i32) -> (i32, i32) {
    %c0_i32 = arith.constant 0 : i32
    %c0_i32_0 = arith.constant 0 : i32
    return %c0_i32, %arg1 : i32, i32
  }
  func.func @transform_5(%arg0: i32, %arg1: i32) -> (i32, i32) {
    %c0_i32 = arith.constant 0 : i32
    return %arg0, %arg1 : i32, i32
  }
}

</mosaic_0001>

<llo_original>
// kernel: tpu_custom_call.1
$region0: #{tpu_custom_call.1}
  #allocation0 [shape = 'u32[]', space=smem, size = 0x4, offset = 0x4, fixed_abs, tag = 'smem constant byte address 0x4 - core index']
  #allocation1 [shape = 'u32[72,128]{1,0:T(1,128)}', space=vmem, size = 0x9000, scoped, tag = 'internal scratch']
  %s0 = inlined_call_operand.vmem [shape: f32[16,32], index: 0, kind: input, shape index: {}]
  %s1 = inlined_call_operand.vmem [shape: f32[128,32], index: 1, kind: input, shape index: {}]
  %s2 = inlined_call_operand.vmem [shape: f32[8,32], index: 2, kind: input, shape index: {}]
  %s3 = inlined_call_operand.vmem [shape: f32[8,128], index: 3, kind: input, shape index: {}]
  %s4 = inlined_call_operand.vmem [shape: f32[1,128], index: 4, kind: input, shape index: {}]
  %s5 = inlined_call_operand.hbm [shape: f32[16,128], index: 5, kind: output, shape index: {}]
  %s6 = sld [smem:[#allocation0]]
  $region30: #{tpu_custom_call.1} parent=0
    _
  %s8 = ssub.s32 1, %s6
  %s9 = scalar_select 0, %s8, %s6
  $region1: #{tpu_custom_call.1} parent=0
    #allocation2 [shape = 'u8[8192]{0}', space=vmem, size = 0x2000, scoped, tag = 'output window, operand 0, single buffered']
    #allocation3 [shape = 's32[1]{0}', space=sflag, size = 0x4, scoped, tag = 'scoped memory for tpu_custom_call.1']
    %10 = vsyncpa [#allocation3], 0
    // Predicated region
    $region2: #{tpu_custom_call.1} parent=1 // pred_check
      _
    $region3: #{tpu_custom_call.1} parent=1 // pred_check_branch
      %12 = sbr.rel (0) target = $region5
    $region4: #{tpu_custom_call.1} parent=1 // pred_region
      _
    $region5: #{tpu_custom_call.1} parent=1 // pred_fallthru
      _
    // Predicated region
    $region6: #{tpu_custom_call.1} parent=1 // pred_check
      _
    $region7: #{tpu_custom_call.1} parent=1 // pred_check_branch
      %14 = sbr.rel (0) target = $region9
    $region8: #{tpu_custom_call.1} parent=1 // pred_region
      _
    $region9: #{tpu_custom_call.1} parent=1 // pred_fallthru
      _
    // Predicated region
    $region10: #{tpu_custom_call.1} parent=1 // pred_check
      _
    $region11: #{tpu_custom_call.1} parent=1 // pred_check_branch
      %16 = sbr.rel (0) target = $region13
    $region12: #{tpu_custom_call.1} parent=1 // pred_region
      _
    $region13: #{tpu_custom_call.1} parent=1 // pred_fallthru
      _
    // Predicated region
    $region14: #{tpu_custom_call.1} parent=1 // pred_check
      _
    $region15: #{tpu_custom_call.1} parent=1 // pred_check_branch
      %18 = sbr.rel (0) target = $region17
    $region16: #{tpu_custom_call.1} parent=1 // pred_region
      _
    $region17: #{tpu_custom_call.1} parent=1 // pred_fallthru
      _
    // Predicated region
    $region18: #{tpu_custom_call.1} parent=1 // pred_check
      _
    $region19: #{tpu_custom_call.1} parent=1 // pred_check_branch
      %20 = sbr.rel (0) target = $region21
    $region20: #{tpu_custom_call.1} parent=1 // pred_region
      _
    $region21: #{tpu_custom_call.1} parent=1 // pred_fallthru
      _
    %v21 = vld [vmem:[%s0] sm:$0xff]
    %v22 = vld [vmem:[%s0 + $0x8] sm:$0xff]
    %v23 = vld [vmem:[%s1] sm:$0xff]
    %v24 = vld [vmem:[%s1 + $0x8] sm:$0xff]
    %v25 = vld [vmem:[%s1 + $0x10] sm:$0xff]
    %v26 = vld [vmem:[%s1 + $0x18] sm:$0xff]
    %v27 = vld [vmem:[%s1 + $0x20] sm:$0xff]
    %v28 = vld [vmem:[%s1 + $0x28] sm:$0xff]
    %v29 = vld [vmem:[%s1 + $0x30] sm:$0xff]
    %v30 = vld [vmem:[%s1 + $0x38] sm:$0xff]
    %v31 = vld [vmem:[%s1 + $0x40] sm:$0xff]
    %v32 = vld [vmem:[%s1 + $0x48] sm:$0xff]
    %v33 = vld [vmem:[%s1 + $0x50] sm:$0xff]
    %v34 = vld [vmem:[%s1 + $0x58] sm:$0xff]
    %v35 = vld [vmem:[%s1 + $0x60] sm:$0xff]
    %v36 = vld [vmem:[%s1 + $0x68] sm:$0xff]
    %v37 = vld [vmem:[%s1 + $0x70] sm:$0xff]
    %v38 = vld [vmem:[%s1 + $0x78] sm:$0xff]
    %v39 = vld [vmem:[%s2] sm:$0xff]
    %vm40 = vcmask 261120
    %v42 = vsel %vm40, %v21, 0
    %v45 = vsel %vm40, %v22, 0
    %v48 = vsel %vm40, %v39, 0
    %50 = vmatpush.xpose.msra.mxu0 0.0
    %51 = vmatpush.xpose.msra.mxu0 0.0
    %52 = vmatpush.xpose.msra.mxu0 0.0
    %53 = vmatpush.xpose.msra.mxu0 0.0
    %54 = vmatpush.xpose.msra.mxu0 0.0
    %55 = vmatpush.xpose.msra.mxu0 0.0
    %56 = vmatpush.xpose.msra.mxu0 0.0
    %57 = vmatpush.xpose.msra.mxu0 0.0
    %58 = vmatpush.xpose.msra.mxu0 0.0
    %59 = vmatpush.xpose.msra.mxu0 0.0
    %60 = vmatpush.xpose.msra.mxu0 0.0
    %61 = vmatpush.xpose.msra.mxu0 0.0
    %62 = vmatpush.xpose.msra.mxu0 0.0
    %63 = vmatpush.xpose.msra.mxu0 0.0
    %64 = vmatpush.xpose.msra.mxu0 0.0
    %65 = vmatpush.xpose.msra.mxu0 %v48
    %66 = vmatmul.f32.gmra.mxu0 %v42
    %v67 = vpop.f32.mrf.mxu0
    %v68 = vadd.f32 0.0, %v67
    %69 = vmatmul.f32.gmra.mxu0 %v45
    %v70 = vpop.f32.mrf.mxu0
    %v71 = vadd.f32 0.0, %v70
    %72 = vdwg.mxu0
    %v73 = vld [vmem:[%s3] sm:$0xff]
    %vm74 = vcmask 64512
    %v76 = vsel %vm74, %v68, 0
    %v79 = vsel %vm74, %v71, 0
    %81 = vmatpush.msra.mxu0 0.0
    %82 = vmatpush.msra.mxu0 0.0
    %83 = vmatpush.msra.mxu0 0.0
    %84 = vmatpush.msra.mxu0 0.0
    %85 = vmatpush.msra.mxu0 0.0
    %86 = vmatpush.msra.mxu0 0.0
    %87 = vmatpush.msra.mxu0 0.0
    %88 = vmatpush.msra.mxu0 0.0
    %89 = vmatpush.msra.mxu0 0.0
    %90 = vmatpush.msra.mxu0 0.0
    %91 = vmatpush.msra.mxu0 0.0
    %92 = vmatpush.msra.mxu0 0.0
    %93 = vmatpush.msra.mxu0 0.0
    %94 = vmatpush.msra.mxu0 0.0
    %95 = vmatpush.msra.mxu0 0.0
    %96 = vmatpush.msra.mxu0 %v73
    %97 = vmatmul.f32.gmra.mxu0 %v76
    %v98 = vpop.f32.mrf.mxu0
    %v99 = vadd.f32 0.0, %v98
    %100 = vmatmul.f32.gmra.mxu0 %v79
    %v101 = vpop.f32.mrf.mxu0
    %v102 = vadd.f32 0.0, %v101
    %103 = vdwg.mxu0
    %v105 = vsel %vm40, %v23, 0
    %v108 = vsel %vm40, %v24, 0
    %v111 = vsel %vm40, %v25, 0
    %v114 = vsel %vm40, %v26, 0
    %v117 = vsel %vm40, %v27, 0
    %v120 = vsel %vm40, %v28, 0
    %v123 = vsel %vm40, %v29, 0
    %v126 = vsel %vm40, %v30, 0
    %v129 = vsel %vm40, %v31, 0
    %v132 = vsel %vm40, %v32, 0
    %v135 = vsel %vm40, %v33, 0
    %v138 = vsel %vm40, %v34, 0
    %v141 = vsel %vm40, %v35, 0
    %v144 = vsel %vm40, %v36, 0
    %v147 = vsel %vm40, %v37, 0
    %v150 = vsel %vm40, %v38, 0
    %152 = vmatpush.xpose.msra.mxu0 %v150
    %153 = vmatpush.xpose.msra.mxu0 %v147
    %154 = vmatpush.xpose.msra.mxu0 %v144
    %155 = vmatpush.xpose.msra.mxu0 %v141
    %156 = vmatpush.xpose.msra.mxu0 %v138
    %157 = vmatpush.xpose.msra.mxu0 %v135
    %158 = vmatpush.xpose.msra.mxu0 %v132
    %159 = vmatpush.xpose.msra.mxu0 %v129
    %160 = vmatpush.xpose.msra.mxu0 %v126
    %161 = vmatpush.xpose.msra.mxu0 %v123
    %162 = vmatpush.xpose.msra.mxu0 %v120
    %163 = vmatpush.xpose.msra.mxu0 %v117
    %164 = vmatpush.xpose.msra.mxu0 %v114
    %165 = vmatpush.xpose.msra.mxu0 %v111
    %166 = vmatpush.xpose.msra.mxu0 %v108
    %167 = vmatpush.xpose.msra.mxu0 %v105
    %168 = vmatmul.f32.gmra.mxu0 %v42
    %v169 = vpop.f32.mrf.mxu0
    %v170 = vadd.f32 %v99, %v169
    %171 = vmatmul.f32.gmra.mxu0 %v45
    %v172 = vpop.f32.mrf.mxu0
    %v173 = vadd.f32 %v102, %v172
    %174 = vdwg.mxu0
    %v175 = vld [vmem:[%s4] sm:$0x1]
    %v177 = vperm.slane %v175, 0
    %v179 = vadd.f32 %v170, %v177
    %v180 = vadd.f32 %v173, %v177
    %181 = vst [vmem:[#allocation2] sm:$0xff] %v179
    %182 = vst [vmem:[#allocation2 + $0x8] sm:$0xff] %v180
    // Predicated region
    $region22: #{tpu_custom_call.1} parent=1 // pred_check
      _
    $region23: #{tpu_custom_call.1} parent=1 // pred_check_branch
      %184 = sbr.rel (0) target = $region25
    $region24: #{tpu_custom_call.1} parent=1 // pred_region
      %186 = vsyncadd [#allocation3], 0
      %s187 = sshll.u32 [#allocation2], 4
      %s188 = int_to_ptr.vmem [resolvable:$true] %s187
      %s189 = sshll.u32 %s5, 4
      %s190 = int_to_ptr.hbm [resolvable:$true] %s189
      %195 = dma.vmem_to_hbm [thread:$0]  %s188, 256, %s190, [#allocation3], 128, 128, 8
    $region25: #{tpu_custom_call.1} parent=1 // pred_fallthru
      _
    // Predicated region
    $region26: #{tpu_custom_call.1} parent=1 // pred_check
      _
    $region27: #{tpu_custom_call.1} parent=1 // pred_check_branch
      %197 = sbr.rel (0) target = $region29
    $region28: #{tpu_custom_call.1} parent=1 // pred_region
      %199 = dma.done [#allocation3], 256
    $region29: #{tpu_custom_call.1} parent=1 // pred_fallthru
      _
    %200 = vsyncpa [#allocation3], 1

</llo_original>
